<compile_context>
chip_gen: v7x
topology: tpu7x:2x2x1
jax: 0.10.0
libtpu: 0.0.40
codegen_flags: <defaults>
</compile_context>

<pallas_src>
import jax
import jax.numpy as jnp
from jax.experimental import pallas as pl
from jax.experimental.pallas import tpu as pltpu

BN_EPS = 1e-5
LANES = 128
MAX_TILE_ROWS = 2048  # (2048,128) f32 = 1 MiB per buffer


def affine_tuple_kernel(ac_ref, x_ref, y1_ref, y2_ref):
    # ac_ref: SMEM (2,) f32 holding the folded affine scalars [A, C].
    a = ac_ref[0]
    c = ac_ref[1]
    y = x_ref[...] * a + c          # one FMA per element, lane-dense
    y1_ref[...] = y
    y2_ref[...] = 2.0 * y


def fold_params(p):
    """Fold Linear(1,2) -> BatchNorm1d(eval) -> Linear(2,1) into y = A*x + C."""
    inv_std = jax.lax.rsqrt(p["bn_rv"] + BN_EPS)                        # (1,2)
    scale = inv_std * p["bn_gamma"]                                      # (1,2)
    a = jnp.sum(p["w1"] * scale * p["w2"])                               # scalar
    c = (jnp.sum(((p["b1"] - p["bn_rm"]) * scale + p["bn_beta"]) * p["w2"])
         + p["b2"][0, 0])                                                # scalar
    return jnp.stack([a, c]).astype(jnp.float32)                         # (2,)


def _pick_tile_rows(rows):
    """Tile rows: multiple of 8, capped at MAX_TILE_ROWS, >=2 grid steps when
    possible so v7x's two TensorCores both get work."""
    if rows < 16:
        return rows
    half = ((rows + 15) // 16) * 8           # ~rows/2, rounded up to sublane
    return max(8, min(MAX_TILE_ROWS, half))


def tuple_returning_net_slab(x_slab, ac):
    """Lane-dense entry point: x_slab is (rows, 128) f32, rows % 8 == 0.
    Returns (y1_slab, y2_slab) with the same shape (padded lanes compute C)."""
    rows = x_slab.shape[0]
    tile_r = _pick_tile_rows(rows)
    grid = (pl.cdiv(rows, tile_r),)
    n_elems = rows * LANES

    row_spec = pl.BlockSpec((tile_r, LANES), lambda i: (i, 0))
    return pl.pallas_call(
        affine_tuple_kernel,
        out_shape=(jax.ShapeDtypeStruct((rows, LANES), jnp.float32),
                   jax.ShapeDtypeStruct((rows, LANES), jnp.float32)),
        grid=grid,
        in_specs=[pl.BlockSpec(memory_space=pltpu.MemorySpace.SMEM),  # [A, C]
                  row_spec],
        out_specs=(row_spec, row_spec),
        compiler_params=pltpu.CompilerParams(
            dimension_semantics=("parallel",),
            vmem_limit_bytes=32 << 20),
        cost_estimate=pl.CostEstimate(
            flops=3 * n_elems,            # FMA + mul per element
            transcendentals=0,
            bytes_accessed=12 * n_elems), # 4 B read + 8 B written per element
    )(ac, x_slab)


def tuple_returning_net(x, params):
    """x: (N, 1) float32. Returns (net(x), 2*net(x)), each (N, 1). Eval mode."""
    n = x.shape[0]
    ac = fold_params(params)

    # Lane-dense slab: pad only to the sublane multiple (rows % 8 == 0).
    rows_needed = pl.cdiv(n, LANES)
    rows = max(8, ((rows_needed + 7) // 8) * 8)
    n_pad = rows * LANES

    x_flat = x.reshape(-1).astype(jnp.float32)
    if n_pad == n:
        x_slab = x_flat.reshape(rows, LANES)          # free view, no pad pass
    else:
        x_slab = (jnp.zeros((n_pad,), jnp.float32).at[:n].set(x_flat)
                  .reshape(rows, LANES))

    y1_slab, y2_slab = tuple_returning_net_slab(x_slab, ac)

    if n_pad == n:
        y1 = y1_slab.reshape(n, 1)
        y2 = y2_slab.reshape(n, 1)
    else:
        y1 = y1_slab.reshape(-1)[:n].reshape(n, 1)
        y2 = y2_slab.reshape(-1)[:n].reshape(n, 1)
    return y1, y2


def init_params(key):
    """Deterministic init mimicking PyTorch defaults (uniform +/- 1/sqrt(fan_in))."""
    k1, k2, k3, k4 = jax.random.split(key, 4)
    # Linear(1, 2): weight (2,1) stored as a (1,2) row vector, bias (1,2)
    bound1 = 1.0  # 1/sqrt(1)
    w1 = jax.random.uniform(k1, (1, 2), jnp.float32, -bound1, bound1)
    b1 = jax.random.uniform(k2, (1, 2), jnp.float32, -bound1, bound1)
    # BatchNorm1d(2): gamma=1, beta=0, running_mean=0, running_var=1
    bn_gamma = jnp.ones((1, 2), jnp.float32)
    bn_beta = jnp.zeros((1, 2), jnp.float32)
    bn_rm = jnp.zeros((1, 2), jnp.float32)
    bn_rv = jnp.ones((1, 2), jnp.float32)
    # Linear(2, 1): weight (1,2), bias (1,1)
    bound2 = 1.0 / (2.0 ** 0.5)
    w2 = jax.random.uniform(k3, (1, 2), jnp.float32, -bound2, bound2)
    b2 = jax.random.uniform(k4, (1, 1), jnp.float32, -bound2, bound2)
    return dict(w1=w1, b1=b1, bn_gamma=bn_gamma, bn_beta=bn_beta,
                bn_rm=bn_rm, bn_rv=bn_rv, w2=w2, b2=b2)


def reference(x, p):
    """Unfolded eval-mode forward for correctness checking."""
    h = x * p["w1"] + p["b1"]
    h = (h - p["bn_rm"]) / jnp.sqrt(p["bn_rv"] + BN_EPS) * p["bn_gamma"] + p["bn_beta"]
    y = jnp.sum(h * p["w2"], axis=-1, keepdims=True) + p["b2"]
    return y, 2.0 * y


if __name__ == "__main__":
    key = jax.random.PRNGKey(0)
    k_x, k_p = jax.random.split(key)
    params = init_params(k_p)

    # Small shape consistent with the module: batch=8, feature=1.
    N = 8
    x = jax.random.normal(k_x, (N, 1), jnp.float32)
    y1, y2 = tuple_returning_net(x, params)
    jax.block_until_ready((y1, y2))

    r1, r2 = reference(x, params)
    assert y1.shape == (N, 1) and y2.shape == (N, 1)
    assert jnp.allclose(y1, r1, atol=1e-5, rtol=1e-5)
    assert jnp.allclose(y2, r2, atol=1e-5, rtol=1e-5)
    assert jnp.allclose(y2, 2.0 * y1, atol=1e-6)

    # A larger, non-divisible batch to exercise multi-step grid + ragged tile.
    N2 = 3000
    x2 = jax.random.normal(k_x, (N2, 1), jnp.float32)
    y1b, y2b = tuple_returning_net(x2, params)
    jax.block_until_ready((y1b, y2b))
    r1b, r2b = reference(x2, params)
    assert jnp.allclose(y1b, r1b, atol=1e-5, rtol=1e-5)
    assert jnp.allclose(y2b, r2b, atol=1e-5, rtol=1e-5)

    print("KERNEL_OK")
</pallas_src>

<mosaic_0001>
module attributes {stable_mosaic.version = 11 : i64} {
  func.func @affine_tuple_kernel(%arg0: i32, %arg1: memref<2xf32, #tpu.memory_space<smem>>, %arg2: memref<8x128xf32, #tpu.memory_space<vmem>>, %arg3: memref<8x128xf32, #tpu.memory_space<vmem>>, %arg4: memref<8x128xf32, #tpu.memory_space<vmem>>) attributes {dimension_semantics = [#tpu.dimension_semantics<parallel>], iteration_bounds = array<i64: 1>, scalar_prefetch = 0 : i64, scratch_operands = 0 : i64, tpu.core_type = #tpu.core_type<tc>, window_params = [{transform_indices = @transform_0, window_bounds = array<i64: 2>}, {transform_indices = @transform_1, window_bounds = array<i64: 8, 128>}, {transform_indices = @transform_2, window_bounds = array<i64: 8, 128>}, {transform_indices = @transform_3, window_bounds = array<i64: 8, 128>}]} {
    %c0 = arith.constant 0 : index
    %0 = memref.load %arg1[%c0] : memref<2xf32, #tpu.memory_space<smem>>
    %c1 = arith.constant 1 : index
    %1 = memref.load %arg1[%c1] : memref<2xf32, #tpu.memory_space<smem>>
    %c0_0 = arith.constant 0 : index
    %c0_1 = arith.constant 0 : index
    %2 = vector.load %arg2[%c0_0, %c0_1] : memref<8x128xf32, #tpu.memory_space<vmem>>, vector<8x128xf32>
    %3 = vector.broadcast %0 : f32 to vector<8x128xf32>
    %4 = arith.mulf %2, %3 : vector<8x128xf32>
    %5 = vector.broadcast %1 : f32 to vector<8x128xf32>
    %6 = arith.addf %4, %5 : vector<8x128xf32>
    %c0_2 = arith.constant 0 : index
    %c0_3 = arith.constant 0 : index
    %7 = vector.load %arg3[%c0_2, %c0_3] : memref<8x128xf32, #tpu.memory_space<vmem>>, vector<8x128xf32>
    tpu.vector_store %arg3[%c0_2, %c0_3], %6 {strides = array<i32>} : memref<8x128xf32, #tpu.memory_space<vmem>>, vector<8x128xf32>,
    %cst = arith.constant 2.000000e+00 : f32
    %8 = vector.broadcast %cst : f32 to vector<8x128xf32>
    %9 = arith.mulf %8, %6 : vector<8x128xf32>
    %c0_4 = arith.constant 0 : index
    %c0_5 = arith.constant 0 : index
    %10 = vector.load %arg4[%c0_4, %c0_5] : memref<8x128xf32, #tpu.memory_space<vmem>>, vector<8x128xf32>
    tpu.vector_store %arg4[%c0_4, %c0_5], %9 {strides = array<i32>} : memref<8x128xf32, #tpu.memory_space<vmem>>, vector<8x128xf32>,
    return
  }
  func.func @transform_0(%arg0: i32) -> i32 {
    %c0_i32 = arith.constant 0 : i32
    %c0_i32_0 = arith.constant 0 : i32
    return %c0_i32 : i32
  }
  func.func @transform_1(%arg0: i32) -> (i32, i32) {
    %c0_i32 = arith.constant 0 : i32
    %c0_i32_0 = arith.constant 0 : i32
    return %arg0, %c0_i32 : i32, i32
  }
  func.func @transform_2(%arg0: i32) -> (i32, i32) {
    %c0_i32 = arith.constant 0 : i32
    %c0_i32_0 = arith.constant 0 : i32
    return %arg0, %c0_i32 : i32, i32
  }
  func.func @transform_3(%arg0: i32) -> (i32, i32) {
    %c0_i32 = arith.constant 0 : i32
    %c0_i32_0 = arith.constant 0 : i32
    return %arg0, %c0_i32 : i32, i32
  }
}

</mosaic_0001>

<llo_original>
// kernel: tpu_custom_call.1
$region0: #{tpu_custom_call.1}
  #allocation0 [shape = 'u32[]', space=smem, size = 0x4, offset = 0x4, fixed_abs, tag = 'smem constant byte address 0x4 - core index']
  #allocation1 [shape = 'u32[144,128]{1,0:T(1,128)}', space=vmem, size = 0x12000, scoped, tag = 'internal scratch']
  %s0 = inlined_call_operand.hbm [shape: f32[2], index: 0, kind: input, shape index: {}]
  %s1 = inlined_call_operand.hbm [shape: f32[8,128], index: 1, kind: input, shape index: {}]
  %s2 = inlined_call_operand.hbm [shape: f32[8,128], index: 2, kind: output, shape index: {0}]
  %s3 = inlined_call_operand.hbm [shape: f32[8,128], index: 3, kind: output, shape index: {1}]
  %4 = xla_tuple %s2, %s3
  %s5 = sld [smem:[#allocation0]]
  $region34: #{tpu_custom_call.1} parent=0
    _
  %s7 = ssub.s32 1, %s5
  %s8 = scalar_select 0, %s7, %s5
  $region1: #{tpu_custom_call.1} parent=0
    #allocation2 [shape = 'u8[512]{0}', space=smem, size = 0x200, scoped, tag = 'input window, operand 0, single buffered']
    #allocation3 [shape = 's32[1]{0}', space=sflag, size = 0x4, scoped, tag = 'scoped memory for tpu_custom_call.1']
    #allocation4 [shape = 's32[1]{0}', space=sflag, size = 0x4, scoped, tag = 'scoped memory for tpu_custom_call.1']
    #allocation5 [shape = 's32[1]{0}', space=sflag, size = 0x4, scoped, tag = 'scoped memory for tpu_custom_call.1']
    #allocation6 [shape = 'u8[4096]{0}', space=vmem, size = 0x1000, scoped, tag = 'input window, operand 1, single buffered']
    #allocation7 [shape = 'u8[4096]{0}', space=vmem, size = 0x1000, scoped, tag = 'output window, operand 0, single buffered']
    #allocation8 [shape = 'u8[4096]{0}', space=vmem, size = 0x1000, scoped, tag = 'output window, operand 1, single buffered']
    #allocation9 [shape = 's32[1]{0}', space=sflag, size = 0x4, scoped, tag = 'scoped memory for tpu_custom_call.1']
    %9 = vsyncpa [#allocation5], 0
    %10 = vsyncpa [#allocation3], 0
    %11 = vsyncpa [#allocation4], 0
    %12 = vsyncpa [#allocation9], 0
    // Predicated region
    $region2: #{tpu_custom_call.1} parent=1 // pred_check
      _
    $region3: #{tpu_custom_call.1} parent=1 // pred_check_branch
      %14 = sbr.rel (0) target = $region5
    $region4: #{tpu_custom_call.1} parent=1 // pred_region
      %s16 = ssub.s32 16, 16
      %17 = vsyncadd [#allocation5], %s16
      %20 = dma.hbm_to_smem %s0, 16, [#allocation2], [#allocation5]
    $region5: #{tpu_custom_call.1} parent=1 // pred_fallthru
      _
    // Predicated region
    $region6: #{tpu_custom_call.1} parent=1 // pred_check
      _
    $region7: #{tpu_custom_call.1} parent=1 // pred_check_branch
      %22 = sbr.rel (0) target = $region9
    $region8: #{tpu_custom_call.1} parent=1 // pred_region
      %s24 = ssub.s32 128, 128
      %25 = vsyncadd [#allocation3], %s24
      %s27 = sshll.u32 [#allocation6], 4
      %s28 = int_to_ptr.vmem [resolvable:$true] %s27
      %30 = dma.hbm_to_vmem [thread:$0]  %s1, 128, %s28, [#allocation3]
    $region9: #{tpu_custom_call.1} parent=1 // pred_fallthru
      _
    // Predicated region
    $region10: #{tpu_custom_call.1} parent=1 // pred_check
      _
    $region11: #{tpu_custom_call.1} parent=1 // pred_check_branch
      %32 = sbr.rel (0) target = $region13
    $region12: #{tpu_custom_call.1} parent=1 // pred_region
      %33 = dma.done [#allocation5], 16
    $region13: #{tpu_custom_call.1} parent=1 // pred_fallthru
      _
    // Predicated region
    $region14: #{tpu_custom_call.1} parent=1 // pred_check
      _
    $region15: #{tpu_custom_call.1} parent=1 // pred_check_branch
      %35 = sbr.rel (0) target = $region17
    $region16: #{tpu_custom_call.1} parent=1 // pred_region
      %36 = dma.done [#allocation3], 128
    $region17: #{tpu_custom_call.1} parent=1 // pred_fallthru
      _
    %37 = sfence
    %s38 = sld [smem:[#allocation2]]
    %s39 = sld [smem:[#allocation2 + $0x1]]
    %v40 = vld [vmem:[#allocation6] sm:$0xff]
    %v41 = vstv %s38
    %v42 = vmul.f32 %v40, %v41
    %v43 = vstv %s39
    %v44 = vadd.f32 %v42, %v43
    %45 = vst [vmem:[#allocation7] sm:$0xff] %v44
    %v46 = vmul.f32 %v44, 2.0
    %47 = vst [vmem:[#allocation8] sm:$0xff] %v46
    // Predicated region
    $region18: #{tpu_custom_call.1} parent=1 // pred_check
      _
    $region19: #{tpu_custom_call.1} parent=1 // pred_check_branch
      %49 = sbr.rel (0) target = $region21
    $region20: #{tpu_custom_call.1} parent=1 // pred_region
      %s51 = ssub.s32 128, 128
      %52 = vsyncadd [#allocation4], %s51
      %s54 = sshll.u32 [#allocation7], 4
      %s55 = int_to_ptr.vmem [resolvable:$true] %s54
      %57 = dma.vmem_to_hbm [thread:$0]  %s55, 128, %s2, [#allocation4]
    $region21: #{tpu_custom_call.1} parent=1 // pred_fallthru
      _
    // Predicated region
    $region22: #{tpu_custom_call.1} parent=1 // pred_check
      _
    $region23: #{tpu_custom_call.1} parent=1 // pred_check_branch
      %59 = sbr.rel (0) target = $region25
    $region24: #{tpu_custom_call.1} parent=1 // pred_region
      %s61 = ssub.s32 128, 128
      %62 = vsyncadd [#allocation9], %s61
      %s64 = sshll.u32 [#allocation8], 4
      %s65 = int_to_ptr.vmem [resolvable:$true] %s64
      %67 = dma.vmem_to_hbm [thread:$0]  %s65, 128, %s3, [#allocation9]
    $region25: #{tpu_custom_call.1} parent=1 // pred_fallthru
      _
    // Predicated region
    $region26: #{tpu_custom_call.1} parent=1 // pred_check
      _
    $region27: #{tpu_custom_call.1} parent=1 // pred_check_branch
      %69 = sbr.rel (0) target = $region29
    $region28: #{tpu_custom_call.1} parent=1 // pred_region
      %70 = dma.done [#allocation4], 128
    $region29: #{tpu_custom_call.1} parent=1 // pred_fallthru
      _
    // Predicated region
    $region30: #{tpu_custom_call.1} parent=1 // pred_check
      _
    $region31: #{tpu_custom_call.1} parent=1 // pred_check_branch
      %72 = sbr.rel (0) target = $region33
    $region32: #{tpu_custom_call.1} parent=1 // pred_region
      %73 = dma.done [#allocation9], 128
    $region33: #{tpu_custom_call.1} parent=1 // pred_fallthru
      _
    %74 = vsyncpa [#allocation3], 1
    %75 = vsyncpa [#allocation4], 1
    %76 = vsyncpa [#allocation9], 1
    %77 = vsyncpa [#allocation5], 1

</llo_original>
